<compile_context>
chip_gen: v7x
topology: tpu7x:2x2x1
jax: 0.10.0
libtpu: 0.0.40
codegen_flags: <defaults>
</compile_context>

<pallas_src>
import functools

import jax
import jax.numpy as jnp
from jax import lax
from jax.experimental import pallas as pl
from jax.experimental.pallas import tpu as pltpu


def _round_up(x, m):
    return (x + m - 1) // m * m


def _vmem_capacity_bytes():
    """Physical VMEM per core; conservative 64 MiB (v7x) fallback."""
    try:
        cap = int(pltpu.get_tpu_info().vmem_capacity_bytes)
        if cap > 0:
            return cap
    except Exception:
        pass
    return 64 * 1024 * 1024


def _choose_tiles(B, S, H, itemsize, batch_tile, seq_tile, budget_bytes):
    """Pick (tb, ts) and return (tb, ts, estimated VMEM usage in bytes)."""
    H_pad = _round_up(H, 128)          # lane dim of h / out / acc pads to 128

    def usage(tb, ts):
        ts_sub = _round_up(ts, 8)       # sublane dim of the h tile
        ts_lane = _round_up(ts, 128)    # lane dim of the mask tile
        h_t = tb * ts_sub * H_pad * itemsize          # (tb, ts, H)
        m_t = tb * 8 * ts_lane * itemsize             # (tb, 1, ts): 1 -> 8 sublanes
        o_t = tb * 8 * H_pad * itemsize               # (tb, 1, H) output block
        l_t = tb * 8 * 128 * 4                        # (tb, 1, 1) f32 inv_len
        a_t = tb * 8 * H_pad * 4                      # f32 accumulator scratch
        return 2 * (h_t + m_t + o_t + l_t) + a_t      # inputs/outputs double-buffered

    # Batch tile: ensure >= 2 batch grid steps when B allows, so the "parallel"
    # axis actually shards across v7x's two TensorCores.
    tb = max(1, min(batch_tile, B))
    if B >= 2 and pl.cdiv(B, tb) < 2:
        tb = pl.cdiv(B, 2)

    if seq_tile is not None:
        if seq_tile >= S:
            ts = S
        else:
            ts = max(128, (min(seq_tile, S) // 128) * 128)   # multi-tile: lanes %128
            if ts >= S:
                ts = S
        return tb, ts, usage(tb, ts)

    while True:
        if usage(tb, S) <= budget_bytes:
            return tb, S, usage(tb, S)                 # whole sequence in one tile
        fixed = usage(tb, 0)                           # ts-independent buffers
        per_pos = 2 * tb * (H_pad + 8) * itemsize      # per seq position, 2 buffers
        ts = ((budget_bytes - fixed) // per_pos) // 128 * 128
        if ts >= S:
            return tb, S, usage(tb, S)
        if ts >= 128:
            return tb, ts, usage(tb, ts)
        if tb <= 1:
            return 1, 128, usage(1, 128)               # over budget; limit has headroom
        tb = max(1, tb // 2)                           # shrink batch tile and retry


def _mean_pool_kernel(h_ref, m_ref, inv_ref, o_ref, acc_ref, *, seq_len, seq_tile):
    # h_ref:   (tb, ts, H)  hidden-state tile
    # m_ref:   (tb, 1, ts)  mask tile (lane-dense), same dtype as h
    # inv_ref: (tb, 1, 1)   1 / clamp(sum(mask), 1e-9), float32
    # o_ref:   (tb, 1, H)   output block (resident across the S axis)
    # acc_ref: (tb, 1, H)   float32 accumulator scratch
    s = pl.program_id(1)

    @pl.when(s == 0)
    def _init():
        acc_ref[...] = jnp.zeros_like(acc_ref)

    h = h_ref[...]
    m = m_ref[...]

    if seq_len % seq_tile != 0:
        # Ragged sequence tail: the edge block's DMA only fills the valid
        # region, so the VMEM tail holds stale bytes (possibly NaN).  Zero
        # both operands past seq_len so 0 * garbage can never poison the
        # accumulator.  Pure VPU selects, hidden under the HBM DMA.
        rem = seq_len - s * seq_tile
        pos_h = lax.broadcasted_iota(jnp.int32, h.shape, 1)
        pos_m = lax.broadcasted_iota(jnp.int32, m.shape, 2)
        h = jnp.where(pos_h < rem, h, jnp.zeros_like(h))
        m = jnp.where(pos_m < rem, m, jnp.zeros_like(m))

    # Multiply + reduce over the sequence tile on the MXU, f32 accumulation.
    acc_ref[...] += jnp.einsum("bms,bsh->bmh", m, h,
                               preferred_element_type=jnp.float32)

    @pl.when(s == pl.num_programs(1) - 1)
    def _finalize():
        o_ref[...] = (acc_ref[...] * inv_ref[...]).astype(o_ref.dtype)


def mean_pooling(last_hidden_states: jax.Array, attention_mask: jax.Array, *,
                 batch_tile: int = 8, seq_tile: int | None = None,
                 vmem_budget_bytes: int | None = None) -> jax.Array:
    """last_hidden_states: (B, S, H); attention_mask: (B, S). Returns (B, H)."""
    B, S, H = last_hidden_states.shape
    dtype = last_hidden_states.dtype
    itemsize = jnp.dtype(dtype).itemsize

    # Generation-aware VMEM budget: ~40% of physical cap, and tiles past a few
    # MiB buy nothing at the HBM roofline, so also cap at 24 MiB.
    cap = _vmem_capacity_bytes()
    if vmem_budget_bytes is None:
        budget = min(int(cap * 0.4), 24 * 1024 * 1024)
    else:
        budget = min(int(vmem_budget_bytes), int(cap * 0.4))

    tb, ts, usage = _choose_tiles(B, S, H, itemsize, batch_tile, seq_tile, budget)

    # Denominator once, in f32, as a reciprocal so finalize is a multiply.
    seq_len = jnp.sum(attention_mask.astype(jnp.float32), axis=1)          # (B,)
    inv_len = (1.0 / jnp.maximum(seq_len, 1e-9)).reshape(B, 1, 1)

    # Lane-dense mask layout: (B, 1, S) with S on lanes, in h's dtype
    # (0/1 values are exact in bf16), so the MXU contraction runs natively.
    mask3 = attention_mask.astype(dtype).reshape(B, 1, S)

    grid = (pl.cdiv(B, tb), pl.cdiv(S, ts))
    kernel = functools.partial(_mean_pool_kernel, seq_len=S, seq_tile=ts)

    # Limit derived from actual usage, with headroom, strictly below physical.
    vmem_limit = min(max(usage + (8 << 20), 32 << 20), cap - (2 << 20))

    out = pl.pallas_call(
        kernel,
        out_shape=jax.ShapeDtypeStruct((B, 1, H), dtype),
        grid_spec=pltpu.PrefetchScalarGridSpec(
            num_scalar_prefetch=0,
            grid=grid,
            in_specs=[
                pl.BlockSpec((tb, ts, H), lambda b, s: (b, s, 0)),   # hidden states
                pl.BlockSpec((tb, 1, ts), lambda b, s: (b, 0, s)),   # mask
                pl.BlockSpec((tb, 1, 1), lambda b, s: (b, 0, 0)),    # 1/len
            ],
            out_specs=pl.BlockSpec((tb, 1, H), lambda b, s: (b, 0, 0)),
            scratch_shapes=[pltpu.VMEM((tb, 1, H), jnp.float32)],
        ),
        compiler_params=pltpu.CompilerParams(
            dimension_semantics=("parallel", "arbitrary"),
            vmem_limit_bytes=int(vmem_limit),
        ),
    )(last_hidden_states, mask3, inv_len)

    return out.reshape(B, H)


def mean_pooling_forward(features: dict) -> dict:
    """Mirrors MeanPooling.forward: updates the features dict in place."""
    mean_embedding = mean_pooling(
        features["last_hidden_states"], features["attention_mask"]
    )
    features.update({"mean_dense_embedding": mean_embedding})
    return features


def _ref_mean_pool(h, m):
    m3 = m.astype(jnp.float32)[..., None]
    return jnp.sum(h.astype(jnp.float32) * m3, axis=1) / jnp.maximum(
        jnp.sum(m3, axis=1), 1e-9)


if __name__ == "__main__":
    # Primary check: small shapes implied by the module (embedding_dimension = 32).
    B, S, H = 2, 8, 32
    key = jax.random.PRNGKey(0)
    k_h, _ = jax.random.split(key)
    last_hidden_states = jax.random.normal(k_h, (B, S, H), dtype=jnp.float32)
    lengths = jnp.array([5, 8], dtype=jnp.int32)
    attention_mask = (
        jnp.arange(S, dtype=jnp.int32)[None, :] < lengths[:, None]
    ).astype(jnp.float32)

    features = {
        "last_hidden_states": last_hidden_states,
        "attention_mask": attention_mask,
    }
    features = mean_pooling_forward(features)
    result = jax.block_until_ready(features["mean_dense_embedding"])
    ref = _ref_mean_pool(last_hidden_states, attention_mask)
    assert result.shape == (B, H)
    assert jnp.allclose(result, ref, atol=1e-5, rtol=1e-5)

    # Ragged sequence tiling (S % ts != 0) with no padding / copying of h.
    B2, S2, H2 = 3, 200, 128
    h2 = jax.random.normal(jax.random.PRNGKey(0), (B2, S2, H2), dtype=jnp.float32)
    len2 = jnp.array([13, 200, 77], dtype=jnp.int32)
    m2 = (jnp.arange(S2, dtype=jnp.int32)[None, :] < len2[:, None]).astype(jnp.float32)
    out2 = jax.block_until_ready(mean_pooling(h2, m2, seq_tile=128))
    assert out2.shape == (B2, H2)
    assert jnp.allclose(out2, _ref_mean_pool(h2, m2), atol=1e-4, rtol=1e-4)

    # Ragged batch (B % tb != 0), bf16 inputs, >= 2 batch grid steps.
    B3, S3, H3 = 10, 256, 64
    h3 = jax.random.normal(jax.random.PRNGKey(0), (B3, S3, H3), dtype=jnp.bfloat16)
    len3 = jnp.arange(1, B3 + 1, dtype=jnp.int32) * 25
    m3 = (jnp.arange(S3, dtype=jnp.int32)[None, :] < len3[:, None]).astype(jnp.float32)
    out3 = jax.block_until_ready(mean_pooling(h3, m3))
    assert out3.shape == (B3, H3)
    assert jnp.allclose(out3.astype(jnp.float32), _ref_mean_pool(h3, m3),
                        atol=1e-2, rtol=2e-2)

    print("KERNEL_OK")
</pallas_src>

<mosaic_0001>
module attributes {stable_mosaic.version = 11 : i64} {
  func.func @_mean_pool_kernel(%arg0: i32, %arg1: i32, %arg2: memref<1x8x32xf32, #tpu.memory_space<vmem>>, %arg3: memref<1x1x8xf32, #tpu.memory_space<vmem>>, %arg4: memref<1x1x1xf32, #tpu.memory_space<vmem>>, %arg5: memref<1x1x32xf32, #tpu.memory_space<vmem>>, %arg6: memref<1x1x32xf32, #tpu.memory_space<vmem>>) attributes {dimension_semantics = [#tpu.dimension_semantics<parallel>, #tpu.dimension_semantics<arbitrary>], iteration_bounds = array<i64: 2, 1>, scalar_prefetch = 0 : i64, scratch_operands = 1 : i64, tpu.core_type = #tpu.core_type<tc>, window_params = [{transform_indices = @transform_0, window_bounds = array<i64: 1, 8, 32>}, {transform_indices = @transform_1, window_bounds = array<i64: 1, 1, 8>}, {transform_indices = @transform_2, window_bounds = array<i64: 1, 1, 1>}, {transform_indices = @transform_3, window_bounds = array<i64: 1, 1, 32>}]} {
    %c0_i32 = arith.constant 0 : i32
    %0 = arith.cmpi eq, %arg1, %c0_i32 : i32
    %1 = arith.extui %0 : i1 to i32
    %c0_i32_0 = arith.constant 0 : i32
    %2 = arith.cmpi ne, %1, %c0_i32_0 : i32
    scf.if %2 {
      %cst_14 = arith.constant 0.000000e+00 : f32
      %12 = vector.broadcast %cst_14 : f32 to vector<1x1x32xf32>
      %c0_15 = arith.constant 0 : index
      %c0_16 = arith.constant 0 : index
      %c0_17 = arith.constant 0 : index
      %13 = vector.load %arg6[%c0_15, %c0_16, %c0_17] : memref<1x1x32xf32, #tpu.memory_space<vmem>>, vector<1x1x32xf32>
      tpu.vector_store %arg6[%c0_15, %c0_16, %c0_17], %12 {strides = array<i32>} : memref<1x1x32xf32, #tpu.memory_space<vmem>>, vector<1x1x32xf32>,
    } else {
    }
    %c0 = arith.constant 0 : index
    %c0_1 = arith.constant 0 : index
    %c0_2 = arith.constant 0 : index
    %3 = vector.load %arg2[%c0, %c0_1, %c0_2] : memref<1x8x32xf32, #tpu.memory_space<vmem>>, vector<1x8x32xf32>
    %c0_3 = arith.constant 0 : index
    %c0_4 = arith.constant 0 : index
    %c0_5 = arith.constant 0 : index
    %4 = vector.load %arg3[%c0_3, %c0_4, %c0_5] : memref<1x1x8xf32, #tpu.memory_space<vmem>>, vector<1x1x8xf32>
    %c0_6 = arith.constant 0 : index
    %c0_7 = arith.constant 0 : index
    %c0_8 = arith.constant 0 : index
    %5 = vector.load %arg6[%c0_6, %c0_7, %c0_8] : memref<1x1x32xf32, #tpu.memory_space<vmem>>, vector<1x1x32xf32>
    "tpu.trace_start"() <{level = 10 : i32, message = "bms,bsh->bmh"}> : () -> ()
    %cst = arith.constant dense<0.000000e+00> : vector<1x1x32xf32>
    %6 = tpu.matmul %4, %3, %cst {dimension_numbers = #tpu.dot_dimension_numbers<[2], [1], [1], [2], [0, 0, 0, 1, 1, 2], [0], [0]>} : vector<1x1x8xf32>, vector<1x8x32xf32>, vector<1x1x32xf32> -> vector<1x1x32xf32>
    "tpu.trace_stop"() : () -> ()
    %7 = arith.addf %5, %6 : vector<1x1x32xf32>
    %c0_9 = arith.constant 0 : index
    %c0_10 = arith.constant 0 : index
    %c0_11 = arith.constant 0 : index
    %8 = vector.load %arg6[%c0_9, %c0_10, %c0_11] : memref<1x1x32xf32, #tpu.memory_space<vmem>>, vector<1x1x32xf32>
    tpu.vector_store %arg6[%c0_9, %c0_10, %c0_11], %7 {strides = array<i32>} : memref<1x1x32xf32, #tpu.memory_space<vmem>>, vector<1x1x32xf32>,
    %c0_i32_12 = arith.constant 0 : i32
    %9 = arith.cmpi eq, %arg1, %c0_i32_12 : i32
    %10 = arith.extui %9 : i1 to i32
    %c0_i32_13 = arith.constant 0 : i32
    %11 = arith.cmpi ne, %10, %c0_i32_13 : i32
    scf.if %11 {
      %c0_14 = arith.constant 0 : index
      %c0_15 = arith.constant 0 : index
      %c0_16 = arith.constant 0 : index
      %12 = vector.load %arg6[%c0_14, %c0_15, %c0_16] : memref<1x1x32xf32, #tpu.memory_space<vmem>>, vector<1x1x32xf32>
      %c0_17 = arith.constant 0 : index
      %c0_18 = arith.constant 0 : index
      %c0_19 = arith.constant 0 : index
      %13 = vector.load %arg4[%c0_17, %c0_18, %c0_19] : memref<1x1x1xf32, #tpu.memory_space<vmem>>, vector<1x1x1xf32>
      %14 = vector.broadcast %13 : vector<1x1x1xf32> to vector<1x1x32xf32>
      %15 = arith.mulf %12, %14 : vector<1x1x32xf32>
      %c0_20 = arith.constant 0 : index
      %c0_21 = arith.constant 0 : index
      %c0_22 = arith.constant 0 : index
      %16 = vector.load %arg5[%c0_20, %c0_21, %c0_22] : memref<1x1x32xf32, #tpu.memory_space<vmem>>, vector<1x1x32xf32>
      tpu.vector_store %arg5[%c0_20, %c0_21, %c0_22], %15 {strides = array<i32>} : memref<1x1x32xf32, #tpu.memory_space<vmem>>, vector<1x1x32xf32>,
    } else {
    }
    return
  }
  func.func @transform_0(%arg0: i32, %arg1: i32) -> (i32, i32, i32) {
    %c0_i32 = arith.constant 0 : i32
    %c0_i32_0 = arith.constant 0 : i32
    return %arg0, %arg1, %c0_i32 : i32, i32, i32
  }
  func.func @transform_1(%arg0: i32, %arg1: i32) -> (i32, i32, i32) {
    %c0_i32 = arith.constant 0 : i32
    %c0_i32_0 = arith.constant 0 : i32
    return %arg0, %c0_i32, %arg1 : i32, i32, i32
  }
  func.func @transform_2(%arg0: i32, %arg1: i32) -> (i32, i32, i32) {
    %c0_i32 = arith.constant 0 : i32
    %c0_i32_0 = arith.constant 0 : i32
    %c0_i32_1 = arith.constant 0 : i32
    return %arg0, %c0_i32, %c0_i32_0 : i32, i32, i32
  }
  func.func @transform_3(%arg0: i32, %arg1: i32) -> (i32, i32, i32) {
    %c0_i32 = arith.constant 0 : i32
    %c0_i32_0 = arith.constant 0 : i32
    %c0_i32_1 = arith.constant 0 : i32
    return %arg0, %c0_i32, %c0_i32_0 : i32, i32, i32
  }
}

</mosaic_0001>

<llo_original>
// kernel: tpu_custom_call.1
$region0: #{tpu_custom_call.1}
  #allocation0 [shape = 'u32[]', space=smem, size = 0x4, offset = 0x4, fixed_abs, tag = 'smem constant byte address 0x4 - core index']
  #allocation1 [shape = 'u32[144,128]{1,0:T(1,128)}', space=vmem, size = 0x12000, scoped, tag = 'internal scratch']
  #allocation2 [shape = 'f32[1,1,32]{2,1,0:T(1,128)}', space=vmem, size = 0x200, scoped, tag = 'scratch operand']
  %s0 = inlined_call_operand.hbm [shape: f32[2,8,32], index: 0, kind: input, shape index: {}]
  %s1 = inlined_call_operand.vmem [shape: f32[2,1,8], index: 1, kind: input, shape index: {}]
  %s2 = inlined_call_operand.vmem [shape: f32[2,1,1], index: 2, kind: input, shape index: {}]
  %s3 = inlined_call_operand.hbm [shape: f32[2,1,32], index: 3, kind: output, shape index: {}]
  %s4 = sld [smem:[#allocation0]]
  $region57: #{tpu_custom_call.1} parent=0
    _
  %s6 = ssub.s32 1, %s4
  %s7 = scalar_select 0, %s6, %s4
  $region1: #{tpu_custom_call.1} parent=0
    #allocation3 [shape = 'u8[8192]{0}', space=vmem, size = 0x2000, scoped, tag = 'input window, operand 0']
    #allocation4 [shape = 's32[2]{0}', space=sflag, size = 0x8, scoped, tag = 'scoped memory for tpu_custom_call.1']
    #allocation5 [shape = 's32[2]{0}', space=sflag, size = 0x8, scoped, tag = 'scoped memory for tpu_custom_call.1']
    #allocation6 [shape = 'u8[1024]{0}', space=vmem, size = 0x400, scoped, tag = 'output window, operand 0']
    %8 = vsyncpa [#allocation4], 0
    %s9 = scalar_lea.sflag [#allocation4], 1
    %10 = vsyncpa %s9, 0
    %11 = vsyncpa [#allocation5], 0
    %s12 = scalar_lea.sflag [#allocation5], 1
    %13 = vsyncpa %s12, 0
    loop: start=0, step=1, limit=4
    $region2: #{tpu_custom_call.1} parent=1 // loop_pre_header
      _
    $region3: #{tpu_custom_call.1} parent=1 // loop_header
      %s15 = sphi 0, %s19
      %p16 = scmp.ge.s32.totalorder %s15, 4
      %s22 = sphi 0, %s34
      %s23 = sphi 0, %s30
      %s24 = sphi 0, %s22
      %s25 = sphi 0, %s23
      %s26 = sphi 0, %s24
      %s27 = sphi 0, %s25
      %s39 = sphi 0, %s41
      %s42 = sphi 0, %s39
      %s43 = sphi 0, %s42
      %s59 = sphi 0, %s43
      %s67 = sphi 0, %s69
      %s70 = sphi 0, %s67
      %s71 = sphi 0, %s70
      %s87 = sphi 0, %s71
      %s93 = sphi 0, %s95
      %s96 = sphi 0, %s93
      %s97 = sphi 0, %s96
      %s113 = sphi 0, %s97
      %s119 = sphi 0, %s121
      %s122 = sphi 0, %s119
      %s123 = sphi 0, %s122
      %s139 = sphi 0, %s123
    $region4: #{tpu_custom_call.1} parent=1 // loop_header_branch
      %18 = sbr.rel (%p16) target = $region8
    $region5: #{tpu_custom_call.1} parent=1 // loop_body
      %s20 = ssub.s32 %s15, 1
      %s21 = ssub.s32 %s15, 2
      %s28 = sadd.s32 1, %s23
      %p29 = scmp.ge.s32.totalorder %s28, 1
      %s30 = scalar_select %p29, 0, %s28
      %s31 = sadd.s32 1, %s22
      %s32 = scalar_select %p29, %s31, %s22
      %p33 = scmp.ge.s32.totalorder %s32, 2
      %s34 = scalar_select %p33, 0, %s32
      %s35 = ssub.s32 %s22, %s34
      %s36 = ssub.s32 %s23, %s30
      %s37 = sor.u32 %s35, %s36
      %p38 = scmp.eq.s32.totalorder %s37, 0
      %s40 = sadd.s32 %s39, 1
      %s41 = scalar_select %p38, %s39, %s40
      %p44 = pneg %p38
      %p45 = scmp.eq.s32.totalorder %s15, 1
      %p46 = por %p44, %p45
      %p47 = scmp.ne.s32.totalorder %s39, %s42
      %p48 = scmp.eq.s32.totalorder %s15, 0
      %p49 = por %p47, %p48
      %p50 = scmp.ne.s32.totalorder %s39, %s42
      %p51 = scmp.eq.s32.totalorder %s20, 1
      %p52 = por %p50, %p51
      %p53 = scmp.ne.s32.totalorder %s42, %s43
      %p54 = scmp.eq.s32.totalorder %s20, 0
      %p55 = por %p53, %p54
      %p56 = scmp.ne.s32.totalorder %s42, %s43
      %p57 = scmp.eq.s32.totalorder %s21, 1
      %p58 = por %p56, %p57
      %p60 = scmp.ne.s32.totalorder %s43, %s59
      %p61 = scmp.eq.s32.totalorder %s21, 0
      %p62 = por %p60, %p61
      %s63 = ssub.s32 %s22, %s34
      %s64 = ssub.s32 %s23, %s30
      %s65 = sor.u32 %s63, %s64
      %p66 = scmp.eq.s32.totalorder %s65, 0
      %s68 = sadd.s32 %s67, 1
      %s69 = scalar_select %p66, %s67, %s68
      %p72 = pneg %p66
      %p73 = scmp.eq.s32.totalorder %s15, 1
      %p74 = por %p72, %p73
      %p75 = scmp.ne.s32.totalorder %s67, %s70
      %p76 = scmp.eq.s32.totalorder %s15, 0
      %p77 = por %p75, %p76
      %p78 = scmp.ne.s32.totalorder %s67, %s70
      %p79 = scmp.eq.s32.totalorder %s20, 1
      %p80 = por %p78, %p79
      %p81 = scmp.ne.s32.totalorder %s70, %s71
      %p82 = scmp.eq.s32.totalorder %s20, 0
      %p83 = por %p81, %p82
      %p84 = scmp.ne.s32.totalorder %s70, %s71
      %p85 = scmp.eq.s32.totalorder %s21, 1
      %p86 = por %p84, %p85
      %p88 = scmp.ne.s32.totalorder %s71, %s87
      %p89 = scmp.eq.s32.totalorder %s21, 0
      %p90 = por %p88, %p89
      %s91 = ssub.s32 %s22, %s34
      %p92 = scmp.eq.s32.totalorder %s91, 0
      %s94 = sadd.s32 %s93, 1
      %s95 = scalar_select %p92, %s93, %s94
      %p98 = pneg %p92
      %p99 = scmp.eq.s32.totalorder %s15, 1
      %p100 = por %p98, %p99
      %p101 = scmp.ne.s32.totalorder %s93, %s96
      %p102 = scmp.eq.s32.totalorder %s15, 0
      %p103 = por %p101, %p102
      %p104 = scmp.ne.s32.totalorder %s93, %s96
      %p105 = scmp.eq.s32.totalorder %s20, 1
      %p106 = por %p104, %p105
      %p107 = scmp.ne.s32.totalorder %s96, %s97
      %p108 = scmp.eq.s32.totalorder %s20, 0
      %p109 = por %p107, %p108
      %p110 = scmp.ne.s32.totalorder %s96, %s97
      %p111 = scmp.eq.s32.totalorder %s21, 1
      %p112 = por %p110, %p111
      %p114 = scmp.ne.s32.totalorder %s97, %s113
      %p115 = scmp.eq.s32.totalorder %s21, 0
      %p116 = por %p114, %p115
      %s117 = ssub.s32 %s22, %s34
      %p118 = scmp.eq.s32.totalorder %s117, 0
      %s120 = sadd.s32 %s119, 1
      %s121 = scalar_select %p118, %s119, %s120
      %p124 = pneg %p118
      %p125 = scmp.eq.s32.totalorder %s15, 1
      %p126 = por %p124, %p125
      %p127 = scmp.ne.s32.totalorder %s119, %s122
      %p128 = scmp.eq.s32.totalorder %s15, 0
      %p129 = por %p127, %p128
      %p130 = scmp.ne.s32.totalorder %s119, %s122
      %p131 = scmp.eq.s32.totalorder %s20, 1
      %p132 = por %p130, %p131
      %p133 = scmp.ne.s32.totalorder %s122, %s123
      %p134 = scmp.eq.s32.totalorder %s20, 0
      %p135 = por %p133, %p134
      %p136 = scmp.ne.s32.totalorder %s122, %s123
      %p137 = scmp.eq.s32.totalorder %s21, 1
      %p138 = por %p136, %p137
      %p140 = scmp.ne.s32.totalorder %s123, %s139
      %p141 = scmp.eq.s32.totalorder %s21, 0
      %p142 = por %p140, %p141
      %p143 = scmp.le.s32.totalorder 1, %s15
      %p144 = scmp.lt.s32.totalorder %s15, 3
      %p145 = pnand %p143, %p144
      %p146 = pneg %p145
      // Predicated region
      $region9: #{tpu_custom_call.1} parent=5 // pred_check
        _
      $region10: #{tpu_custom_call.1} parent=5 // pred_check_branch
        %148 = sbr.rel (%p145) target = $region12
      $region11: #{tpu_custom_call.1} parent=5 // pred_region
        %s149 = ssub.s32 %s15, 1
      $region12: #{tpu_custom_call.1} parent=5 // pred_fallthru
        _
      %p150 = scmp.lt.s32.totalorder %s15, 2
      // Predicated region
      $region13: #{tpu_custom_call.1} parent=5 // pred_check
        %p151 = pneg %p150
      $region14: #{tpu_custom_call.1} parent=5 // pred_check_branch
        %153 = sbr.rel (%p151) target = $region16
      $region15: #{tpu_custom_call.1} parent=5 // pred_region
        // Predicated region
        $region17: #{tpu_custom_call.1} parent=15 // pred_check
          %p154 = pneg %p49
        $region18: #{tpu_custom_call.1} parent=15 // pred_check_branch
          %156 = sbr.rel (%p154) target = $region20
        $region19: #{tpu_custom_call.1} parent=15 // pred_region
          %s157 = sand.u32 %s39, 1
          %s158 = scalar_lea.sflag [#allocation4], %s157
          %s159 = sand.u32 %s39, 1
          %s160 = smul.addr %s159, 8
          %s161 = scalar_lea.vmem [#allocation3], %s160
          %s163 = ssub.s32 128, 128
          %164 = vsyncadd %s158, %s163
          %s165 = sadd.s32 %s23, %s22
          %s166 = smul.addr %s165, 128
          %s167 = scalar_lea.hbm %s0, %s166
          %s169 = sshll.u32 %s161, 4
          %s170 = int_to_ptr.vmem [resolvable:$true] %s169
          %172 = dma.hbm_to_vmem [thread:$0]  %s167, 128, %s170, %s158
        $region20: #{tpu_custom_call.1} parent=15 // pred_fallthru
          _
        // Predicated region
        $region21: #{tpu_custom_call.1} parent=15 // pred_check
          %p173 = pneg %p77
        $region22: #{tpu_custom_call.1} parent=15 // pred_check_branch
          %175 = sbr.rel (%p173) target = $region24
        $region23: #{tpu_custom_call.1} parent=15 // pred_region
          %p176 = scmp.lt.s32.totalorder %s22, 1
          %s177 = scalar_select %p176, %s22, 1
          %p178 = scmp.lt.s32.totalorder %s23, 0
          %s179 = scalar_select %p178, %s23, 0
          %s180 = sadd.s32 %s179, %s177
          %s181 = scalar_lea.vmem %s1, %s180
        $region24: #{tpu_custom_call.1} parent=15 // pred_fallthru
          _
        // Predicated region
        $region25: #{tpu_custom_call.1} parent=15 // pred_check
          %p182 = pneg %p103
        $region26: #{tpu_custom_call.1} parent=15 // pred_check_branch
          %184 = sbr.rel (%p182) target = $region28
        $region27: #{tpu_custom_call.1} parent=15 // pred_region
          %p185 = scmp.lt.s32.totalorder %s22, 1
          %s186 = scalar_select %p185, %s22, 1
          %s187 = scalar_lea.vmem %s2, %s186
        $region28: #{tpu_custom_call.1} parent=15 // pred_fallthru
          _
      $region16: #{tpu_custom_call.1} parent=5 // pred_fallthru
        _
      %p188 = scmp.le.s32.totalorder 1, %s15
      %p189 = scmp.lt.s32.totalorder %s15, 3
      %p190 = pnand %p188, %p189
      %p191 = pneg %p190
      // Predicated region
      $region29: #{tpu_custom_call.1} parent=5 // pred_check
        _
      $region30: #{tpu_custom_call.1} parent=5 // pred_check_branch
        %193 = sbr.rel (%p190) target = $region32
      $region31: #{tpu_custom_call.1} parent=5 // pred_region
        %s194 = ssub.s32 %s15, 1
        %s195 = sand.u32 %s42, 1
        %s196 = scalar_lea.sflag [#allocation4], %s195
        %s197 = sand.u32 %s42, 1
        %s198 = smul.addr %s197, 8
        %s199 = scalar_lea.vmem [#allocation3], %s198
        // Predicated region
        $region33: #{tpu_custom_call.1} parent=31 // pred_check
          %p200 = pneg %p55
        $region34: #{tpu_custom_call.1} parent=31 // pred_check_branch
          %202 = sbr.rel (%p200) target = $region36
        $region35: #{tpu_custom_call.1} parent=31 // pred_region
          %203 = dma.done %s196, 128
        $region36: #{tpu_custom_call.1} parent=31 // pred_fallthru
          _
        %s204 = sand.u32 %s42, 1
        %s205 = scalar_lea.sflag [#allocation4], %s204
        %s206 = sand.u32 %s42, 1
        %s207 = smul.addr %s206, 8
        %s208 = scalar_lea.vmem [#allocation3], %s207
        %p209 = pneg %p55
        %p210 = pneg %p52
        %p211 = scmp.lt.s32.totalorder %s24, 1
        %s212 = scalar_select %p211, %s24, 1
        %p213 = scmp.lt.s32.totalorder %s25, 0
        %s214 = scalar_select %p213, %s25, 0
        %s215 = sadd.s32 %s214, %s212
        %s216 = scalar_lea.vmem %s1, %s215
        %p217 = pneg %p83
        %p218 = pneg %p80
        %p219 = scmp.lt.s32.totalorder %s24, 1
        %s220 = scalar_select %p219, %s24, 1
        %s221 = scalar_lea.vmem %s2, %s220
        %p222 = pneg %p109
        %p223 = pneg %p106
        %p224 = pneg %p135
        %p225 = pneg %p132
        %s226 = sand.u32 %s122, 1
        %s227 = scalar_lea.sflag [#allocation5], %s226
        %s228 = sand.u32 %s122, 1
        %s229 = scalar_lea.vmem [#allocation6], %s228
        %p230 = scmp.lt.s32.totalorder %s24, 1
        %s231 = scalar_select %p230, %s24, 1
        %p232 = scmp.lt.s32.totalorder %s25, 0
        %s233 = scalar_select %p232, %s25, 0
        %s234 = sadd.s32 %s233, %s231
        %s235 = scalar_lea.vmem %s1, %s234
        %p236 = scmp.lt.s32.totalorder %s24, 1
        %s237 = scalar_select %p236, %s24, 1
        %s238 = scalar_lea.vmem %s2, %s237
        %p239 = scmp.eq.s32.totalorder %s25, 0
        // Predicated region
        $region37: #{tpu_custom_call.1} parent=31 // pred_check
          %p240 = pneg %p239
        $region38: #{tpu_custom_call.1} parent=31 // pred_check_branch
          %242 = sbr.rel (%p240) target = $region40
        $region39: #{tpu_custom_call.1} parent=31 // pred_region
          %vm243 = vcmask 253952
          %244 = vst.msk [vmem:[#allocation2] sm:$0x1] %vm243, 0.0
        $region40: #{tpu_custom_call.1} parent=31 // pred_fallthru
          _
        %v245 = vld [vmem:[%s199] sm:$0xff]
        %v246 = vld [vmem:[%s235] sm:$0x1]
        %v247 = vld [vmem:[#allocation2] sm:$0x1]
        %vm248 = vcmask 64512
        %v250 = vsel %vm248, %v246, 0
        %252 = vmatprep.subr.mxu0 0.0
        %253 = vmatpush1.msra.mxu0 %v245
        %254 = vmatprep.subr.mxu0 0.0
        %255 = vmatpush1.msra.mxu0 0.0
        %256 = vmatprep.subr.mxu0 0.0
        %257 = vmatpush1.msra.mxu0 0.0
        %258 = vmatprep.subr.mxu0 0.0
        %259 = vmatpush1.msra.mxu0 0.0
        %260 = vmatprep.subr.mxu0 0.0
        %261 = vmatpush1.msra.mxu0 0.0
        %262 = vmatprep.subr.mxu0 0.0
        %263 = vmatpush1.msra.mxu0 0.0
        %264 = vmatprep.subr.mxu0 0.0
        %265 = vmatpush1.msra.mxu0 0.0
        %266 = vmatprep.subr.mxu0 0.0
        %267 = vmatpush1.msra.mxu0 0.0
        %268 = vmatprep.subr.mxu0 0.0
        %269 = vmatpush1.msra.mxu0 0.0
        %270 = vmatprep.subr.mxu0 0.0
        %271 = vmatpush1.msra.mxu0 0.0
        %272 = vmatprep.subr.mxu0 0.0
        %273 = vmatpush1.msra.mxu0 0.0
        %274 = vmatprep.subr.mxu0 0.0
        %275 = vmatpush1.msra.mxu0 0.0
        %276 = vmatprep.subr.mxu0 0.0
        %277 = vmatpush1.msra.mxu0 0.0
        %278 = vmatprep.subr.mxu0 0.0
        %279 = vmatpush1.msra.mxu0 0.0
        %280 = vmatprep.subr.mxu0 0.0
        %281 = vmatpush1.msra.mxu0 0.0
        %282 = vmatprep.subr.mxu0 0.0
        %283 = vmatpush1.msra.mxu0 0.0
        %284 = vmatprep.subr.mxu0 0.0
        %285 = vmatpush1.msra.mxu0 0.0
        %286 = vmatprep.subr.mxu0 0.0
        %287 = vmatpush1.msra.mxu0 0.0
        %288 = vmatprep.subr.mxu0 0.0
        %289 = vmatpush1.msra.mxu0 0.0
        %290 = vmatprep.subr.mxu0 0.0
        %291 = vmatpush1.msra.mxu0 0.0
        %292 = vmatprep.subr.mxu0 0.0
        %293 = vmatpush1.msra.mxu0 0.0
        %294 = vmatprep.subr.mxu0 0.0
        %295 = vmatpush1.msra.mxu0 0.0
        %296 = vmatprep.subr.mxu0 0.0
        %297 = vmatpush1.msra.mxu0 0.0
        %298 = vmatprep.subr.mxu0 0.0
        %299 = vmatpush1.msra.mxu0 0.0
        %300 = vmatprep.subr.mxu0 0.0
        %301 = vmatpush1.msra.mxu0 0.0
        %302 = vmatprep.subr.mxu0 0.0
        %303 = vmatpush1.msra.mxu0 0.0
        %304 = vmatprep.subr.mxu0 0.0
        %305 = vmatpush1.msra.mxu0 0.0
        %306 = vmatprep.subr.mxu0 0.0
        %307 = vmatpush1.msra.mxu0 0.0
        %308 = vmatprep.subr.mxu0 0.0
        %309 = vmatpush1.msra.mxu0 0.0
        %310 = vmatprep.subr.mxu0 0.0
        %311 = vmatpush1.msra.mxu0 0.0
        %312 = vmatprep.subr.mxu0 0.0
        %313 = vmatpush1.msra.mxu0 0.0
        %314 = vmatprep.subr.mxu0 0.0
        %315 = vmatpush1.msra.mxu0 0.0
        %316 = vmatprep.mubr.f32.mxu0 0.0
        %317 = vmatmul.mubr.f32.gmra.mrb[0].mxu0 %v250
        %v318 = vpop.f32.mrb[0].mxu0
        %v319 = vadd.f32 0.0, %v318
        %v320 = vpop.f32.mrb[0].mxu0
        %321 = vdwg.mxu0
        %v322 = vadd.f32 %v247, %v319
        %vm323 = vcmask 253952
        %324 = vst.msk [vmem:[#allocation2] sm:$0x1] %vm323, %v322
        // Predicated region
        $region41: #{tpu_custom_call.1} parent=31 // pred_check
          %p325 = pneg %p239
        $region42: #{tpu_custom_call.1} parent=31 // pred_check_branch
          %327 = sbr.rel (%p325) target = $region44
        $region43: #{tpu_custom_call.1} parent=31 // pred_region
          %v328 = vld [vmem:[#allocation2] sm:$0x1]
          %v329 = vld [vmem:[%s238] sm:$0x1]
          %331 = vset.pattern.permute.xlu0 0
          %332 = vperm.xlu0 %331, %v329
          %v333 = vpop.permute.xlu0 %332
          %v335 = vlaneseq
          %v336 = vshrl.u32 %v335, 7
          %v337 = vsub.s32 0, %v336
          %v338 = vrot.slane %v333, %v337
          %v339 = vmul.f32 %v328, %v338
          %340 = vst.msk [vmem:[%s229] sm:$0x1] %vm323, %v339
        $region44: #{tpu_custom_call.1} parent=31 // pred_fallthru
          _
        %s341 = sand.u32 %s122, 1
        %s342 = scalar_lea.sflag [#allocation5], %s341
        %s343 = sand.u32 %s122, 1
        %s344 = scalar_lea.vmem [#allocation6], %s343
        // Predicated region
        $region45: #{tpu_custom_call.1} parent=31 // pred_check
          %p345 = pneg %p132
        $region46: #{tpu_custom_call.1} parent=31 // pred_check_branch
          %347 = sbr.rel (%p345) target = $region48
        $region47: #{tpu_custom_call.1} parent=31 // pred_region
          %s349 = ssub.s32 16, 16
          %350 = vsyncadd %s342, %s349
          %s351 = smul.addr %s24, 16
          %s352 = scalar_lea.hbm %s3, %s351
          %s354 = sshll.u32 %s344, 4
          %s355 = int_to_ptr.vmem [resolvable:$true] %s354
          %357 = dma.vmem_to_hbm [thread:$0]  %s355, 16, %s352, %s342
        $region48: #{tpu_custom_call.1} parent=31 // pred_fallthru
          _
      $region32: #{tpu_custom_call.1} parent=5 // pred_fallthru
        _
      %p358 = scmp.le.s32.totalorder 2, %s15
      // Predicated region
      $region49: #{tpu_custom_call.1} parent=5 // pred_check
        %p359 = pneg %p358
      $region50: #{tpu_custom_call.1} parent=5 // pred_check_branch
        %361 = sbr.rel (%p359) target = $region52
      $region51: #{tpu_custom_call.1} parent=5 // pred_region
        %s362 = ssub.s32 %s15, 2
        // Predicated region
        $region53: #{tpu_custom_call.1} parent=51 // pred_check
          %p363 = pneg %p138
        $region54: #{tpu_custom_call.1} parent=51 // pred_check_branch
          %365 = sbr.rel (%p363) target = $region56
        $region55: #{tpu_custom_call.1} parent=51 // pred_region
          %s366 = sand.u32 %s123, 1
          %s367 = scalar_lea.sflag [#allocation5], %s366
          %s368 = sand.u32 %s123, 1
          %s369 = scalar_lea.vmem [#allocation6], %s368
          %370 = dma.done %s367, 16
        $region56: #{tpu_custom_call.1} parent=51 // pred_fallthru
          _
      $region52: #{tpu_custom_call.1} parent=5 // pred_fallthru
        _
    $region6: #{tpu_custom_call.1} parent=1 // loop_footer
      %s19 = sadd.s32 1, %s15
    $region7: #{tpu_custom_call.1} parent=1 // loop_footer_branch
      %14 = sbr.rel target = $region3
    $region8: #{tpu_custom_call.1} parent=1 // loop_exit
      _
    %371 = vsyncpa [#allocation4], 1
    %s372 = scalar_lea.sflag [#allocation4], 1
    %373 = vsyncpa %s372, 1
    %374 = vsyncpa [#allocation5], 1
    %s375 = scalar_lea.sflag [#allocation5], 1
    %376 = vsyncpa %s375, 1

</llo_original>
